<compile_context>
chip_gen: v6e
topology: v6e:2x2x1
jax: 0.10.0
libtpu: 0.0.40
codegen_flags: <defaults>
</compile_context>

<pallas_src>
import functools

import jax
import jax.numpy as jnp
from jax import lax
from jax.experimental import pallas as pl
from jax.experimental.pallas import tpu as pltpu


def _round_up(x, m):
    return (x + m - 1) // m * m


def _vmem_capacity_bytes():
    """Per-core VMEM capacity; conservative 64 MiB fallback (v7x-sized)."""
    try:
        cap = getattr(pltpu.get_tpu_info(), "vmem_capacity_bytes", None)
        if cap:
            return int(cap)
    except Exception:
        pass
    return 64 * 1024 * 1024


def _vmem_bytes(tm, tn, d, in_bytes):
    """Rough per-step VMEM footprint: double-buffered inputs + f32 logits tmps."""
    inputs = 2 * (tm + tn) * d * in_bytes      # row + colT tiles, double-buffered
    logits = 4 * tm * tn * 4                   # s / exp / masked temporaries (f32)
    small = 4 * tm * 4                         # lse out blocks + m/l scratch
    return inputs + logits + small


def _ntxent_lse_kernel(row_ref, colT_ref, lse_ref, m_sc, l_sc, *,
                       n_valid, has_col_pad):
    """Online logsumexp over all columns j != i of sim[i, :] / temperature.

    row_ref  : (TM, D)  pre-normalized rows, already scaled by 1/temperature.
    colT_ref : (D, TN)  pre-normalized columns, pre-transposed (no in-kernel
                        transpose; MXU sees a plain (TM,D)x(D,TN)).
    """
    i = pl.program_id(0)          # row tile (parallel)
    j = pl.program_id(1)          # col tile (reduction, innermost)
    tm = row_ref.shape[0]
    tn = colT_ref.shape[1]

    @pl.when(j == 0)
    def _init():
        m_sc[...] = jnp.full(m_sc.shape, -jnp.inf, dtype=m_sc.dtype)
        l_sc[...] = jnp.zeros(l_sc.shape, dtype=l_sc.dtype)

    # (TM, TN) logits tile on the MXU: bf16 (default) or f32 operands, f32 acc.
    # Inputs were normalized / clamped / temperature-scaled once outside.
    s = lax.dot_general(row_ref[...], colT_ref[...],
                        (((1,), (0,)), ((), ())),
                        preferred_element_type=jnp.float32)

    row0 = i * tm
    col0 = j * tn
    # Does this tile touch the self-similarity diagonal or padded columns?
    diag_overlap = (row0 < col0 + tn) & (col0 < row0 + tm)
    if has_col_pad:
        need_mask = diag_overlap | (col0 + tn > n_valid)
    else:
        need_mask = diag_overlap

    def _update(s_tile):
        m_prev = m_sc[...]
        m_new = jnp.maximum(m_prev, jnp.max(s_tile, axis=-1, keepdims=True))
        alpha = jnp.exp(m_prev - m_new)
        l_sc[...] = alpha * l_sc[...] + jnp.sum(jnp.exp(s_tile - m_new),
                                                axis=-1, keepdims=True)
        m_sc[...] = m_new

    @pl.when(need_mask)
    def _masked():
        # In-tile iota only; runs on the handful of diagonal / last-column tiles.
        rid = row0 + lax.broadcasted_iota(jnp.int32, s.shape, 0)
        cid = col0 + lax.broadcasted_iota(jnp.int32, s.shape, 1)
        mask = rid == cid
        if has_col_pad:
            mask = mask | (cid >= n_valid)
        _update(jnp.where(mask, -jnp.inf, s))

    @pl.when(jnp.logical_not(need_mask))
    def _plain():
        _update(s)

    @pl.when(j == pl.num_programs(1) - 1)
    def _finalize():
        lse_ref[...] = m_sc[...] + jnp.log(l_sc[...])


def ntxent_loss(zis, zjs, anchor=None, *, temperature=0.2,
                block_rows=1024, block_cols=256,
                matmul_dtype=jnp.bfloat16):
    """NT-Xent loss matching NTXentLoss.forward (anchor is unused there)."""
    del anchor  # unused in the reference forward pass
    b, d = zis.shape
    n2 = 2 * b
    inv_temp = 1.0 / float(temperature)
    in_bytes = jnp.dtype(matmul_dtype).itemsize

    # --- one-time O(2B*D) preprocessing (outside the grid) --------------------
    # representations = cat([zjs, zis], dim=0), cosine-normalized.
    # NOTE: eps clamp is per-vector (||x|| >= 1e-8); torch clamps the product of
    # norms — differs only for near-zero-norm inputs.
    reps = jnp.concatenate([zjs, zis], axis=0).astype(jnp.float32)
    reps_n = reps * lax.rsqrt(
        jnp.maximum(jnp.sum(reps * reps, axis=-1, keepdims=True), 1e-16))

    # Positive logit: partner of row i is (i + B) % 2B, i.e. cos(zjs_i, zis_i)/T
    # duplicated for both halves.  Kept in f32.
    pos_half = jnp.sum(reps_n[:b] * reps_n[b:], axis=-1) * inv_temp   # (B,)
    pos = jnp.concatenate([pos_half, pos_half])                       # (2B,)

    # --- tile selection (VMEM-budget driven) ----------------------------------
    vmem_cap = _vmem_capacity_bytes()
    vmem_limit = int(vmem_cap * 0.75)      # 48 MiB on v7x, 96 MiB on v5e/v6e
    budget = int(vmem_cap * 0.50)

    tm_d = max(8, _round_up(block_rows, 8))       # large row tile: HBM traffic
    tn_d = max(128, _round_up(block_cols, 128))   # lane-dim of the colT block
    while _vmem_bytes(tm_d, tn_d, d, in_bytes) > budget:
        if tn_d > 128:
            tn_d = max(128, (tn_d // 2 // 128) * 128)
        elif tm_d > 8:
            tm_d = max(8, (tm_d // 2 // 8) * 8)
        else:
            break

    # Fit tiles to the problem; rows/cols padded independently (waste <= ~1 tile).
    g_r = pl.cdiv(n2, tm_d)
    tm = _round_up(pl.cdiv(n2, g_r), 8)
    n_rows_pad = g_r * tm
    g_c = pl.cdiv(n2, tn_d)
    tn = _round_up(pl.cdiv(n2, g_c), 128)
    n_cols_pad = g_c * tn
    has_col_pad = n_cols_pad > n2

    # --- operand layout --------------------------------------------------------
    # Row stream: 1/temperature folded in; matmul dtype; padded rows are zero
    # (their lse entries are sliced off before the mean).
    row_in = (reps_n * inv_temp).astype(matmul_dtype)
    row_in = jnp.pad(row_in, ((0, n_rows_pad - n2), (0, 0)))           # (Nr, D)
    # Column stream: pre-transposed so the MXU contraction is (TM,D)x(D,TN);
    # padded columns are zero and masked in-kernel.
    colT_in = jnp.pad(reps_n.astype(matmul_dtype),
                      ((0, n_cols_pad - n2), (0, 0))).T                # (D, Nc)

    kernel = functools.partial(_ntxent_lse_kernel, n_valid=n2,
                               has_col_pad=has_col_pad)

    lse = pl.pallas_call(
        kernel,
        out_shape=jax.ShapeDtypeStruct((n_rows_pad, 1), jnp.float32),
        grid_spec=pltpu.PrefetchScalarGridSpec(
            num_scalar_prefetch=0,
            grid=(g_r, g_c),
            in_specs=[
                pl.BlockSpec((tm, d), lambda i, j: (i, 0)),   # row tile
                pl.BlockSpec((d, tn), lambda i, j: (0, j)),   # pre-transposed col
            ],
            out_specs=pl.BlockSpec((tm, 1), lambda i, j: (i, 0)),
            scratch_shapes=[pltpu.VMEM((tm, 1), jnp.float32),   # running max
                            pltpu.VMEM((tm, 1), jnp.float32)],  # running sum
        ),
        # TODO(synk): on v7x, verify with xprof that the row axis is sharded
        # across both TensorCores; switch to pltpu.CORE_PARALLEL if not.
        compiler_params=pltpu.CompilerParams(
            dimension_semantics=("parallel", "arbitrary"),
            vmem_limit_bytes=vmem_limit),
    )(row_in, colT_in)

    lse = lse[:n2, 0]                                          # (2B,)

    # CrossEntropyLoss(reduction='sum') with label 0, divided by 2B.
    return jnp.mean(lse - pos)


def _ntxent_reference(zis, zjs, temperature):
    """Pure-JAX reference mirroring the PyTorch module, for validation."""
    reps = jnp.concatenate([zjs, zis], axis=0).astype(jnp.float32)
    b = zis.shape[0]
    n2 = 2 * b
    norm = jnp.maximum(jnp.linalg.norm(reps, axis=-1, keepdims=True), 1e-8)
    rn = reps / norm
    sim = jnp.matmul(rn, rn.T, precision=lax.Precision.HIGHEST)
    l_pos = jnp.diagonal(sim, offset=b)
    r_pos = jnp.diagonal(sim, offset=-b)
    positives = jnp.concatenate([l_pos, r_pos]).reshape(n2, 1)
    eye = jnp.eye(n2, dtype=bool)
    up = jnp.eye(n2, k=b, dtype=bool)
    lo = jnp.eye(n2, k=-b, dtype=bool)
    neg_mask = ~(eye | up | lo)
    negatives = sim[neg_mask].reshape(n2, n2 - 2)
    logits = jnp.concatenate([positives, negatives], axis=1) / temperature
    lse = jax.scipy.special.logsumexp(logits, axis=-1)
    loss = jnp.sum(lse - logits[:, 0])
    return loss / n2


if __name__ == "__main__":
    key = jax.random.PRNGKey(0)
    k1, k2, k3 = jax.random.split(key, 3)

    batch_size, feat_dim, temperature = 4, 32, 0.2
    zis = jax.random.normal(k1, (batch_size, feat_dim), dtype=jnp.float32)
    zjs = jax.random.normal(k2, (batch_size, feat_dim), dtype=jnp.float32)
    anchor = jax.random.normal(k3, (batch_size, feat_dim), dtype=jnp.float32)

    ref = _ntxent_reference(zis, zjs, temperature)

    # Default path: bf16 MXU operands, f32 accumulation (looser tolerance).
    loss = jax.block_until_ready(
        ntxent_loss(zis, zjs, anchor, temperature=temperature))
    assert jnp.allclose(loss, ref, rtol=5e-2, atol=5e-2), (loss, ref)

    # f32 accuracy mode (opt-in), tight tolerance.
    loss_f32 = jax.block_until_ready(
        ntxent_loss(zis, zjs, anchor, temperature=temperature,
                    matmul_dtype=jnp.float32))
    assert jnp.allclose(loss_f32, ref, rtol=1e-5, atol=1e-5), (loss_f32, ref)

    # Multi-tile case: several row/column tiles, gated diagonal masking,
    # padded-column masking and the online logsumexp across column tiles.
    kb1, kb2 = jax.random.split(jax.random.PRNGKey(1))
    b2, d2 = 180, 64
    zis2 = jax.random.normal(kb1, (b2, d2), dtype=jnp.float32)
    zjs2 = jax.random.normal(kb2, (b2, d2), dtype=jnp.float32)
    ref2 = _ntxent_reference(zis2, zjs2, temperature)

    loss2_f32 = jax.block_until_ready(
        ntxent_loss(zis2, zjs2, temperature=temperature,
                    block_rows=128, block_cols=128,
                    matmul_dtype=jnp.float32))
    assert jnp.allclose(loss2_f32, ref2, rtol=1e-5, atol=1e-5), (loss2_f32, ref2)

    loss2_bf16 = jax.block_until_ready(
        ntxent_loss(zis2, zjs2, temperature=temperature,
                    block_rows=128, block_cols=128))
    assert jnp.allclose(loss2_bf16, ref2, rtol=5e-2, atol=5e-2), (loss2_bf16, ref2)

    print("KERNEL_OK")
</pallas_src>

<mosaic_0001>
module attributes {stable_mosaic.version = 11 : i64} {
  func.func @_ntxent_lse_kernel(%arg0: i32, %arg1: i32, %arg2: memref<8x32xbf16, #tpu.memory_space<vmem>>, %arg3: memref<32x128xbf16, #tpu.memory_space<vmem>>, %arg4: memref<8x1xf32, #tpu.memory_space<vmem>>, %arg5: memref<8x1xf32, #tpu.memory_space<vmem>>, %arg6: memref<8x1xf32, #tpu.memory_space<vmem>>) attributes {dimension_semantics = [#tpu.dimension_semantics<parallel>, #tpu.dimension_semantics<arbitrary>], iteration_bounds = array<i64: 1, 1>, scalar_prefetch = 0 : i64, scratch_operands = 2 : i64, tpu.core_type = #tpu.core_type<tc>, window_params = [{transform_indices = @transform_0, window_bounds = array<i64: 8, 32>}, {transform_indices = @transform_1, window_bounds = array<i64: 32, 128>}, {transform_indices = @transform_2, window_bounds = array<i64: 8, 1>}]} {
    %c0_i32 = arith.constant 0 : i32
    %0 = arith.cmpi eq, %arg1, %c0_i32 : i32
    %1 = arith.extui %0 : i1 to i32
    %c0_i32_0 = arith.constant 0 : i32
    %2 = arith.cmpi ne, %1, %c0_i32_0 : i32
    scf.if %2 {
      %cst_12 = arith.constant 0xFF800000 : f32
      %24 = vector.broadcast %cst_12 : f32 to vector<8x1xf32>
      %c0_13 = arith.constant 0 : index
      %c0_14 = arith.constant 0 : index
      %25 = vector.load %arg5[%c0_13, %c0_14] : memref<8x1xf32, #tpu.memory_space<vmem>>, vector<8x1xf32>
      tpu.vector_store %arg5[%c0_13, %c0_14], %24 {strides = array<i32>} : memref<8x1xf32, #tpu.memory_space<vmem>>, vector<8x1xf32>,
      %cst_15 = arith.constant 0.000000e+00 : f32
      %26 = vector.broadcast %cst_15 : f32 to vector<8x1xf32>
      %c0_16 = arith.constant 0 : index
      %c0_17 = arith.constant 0 : index
      %27 = vector.load %arg6[%c0_16, %c0_17] : memref<8x1xf32, #tpu.memory_space<vmem>>, vector<8x1xf32>
      tpu.vector_store %arg6[%c0_16, %c0_17], %26 {strides = array<i32>} : memref<8x1xf32, #tpu.memory_space<vmem>>, vector<8x1xf32>,
    } else {
    }
    %c0 = arith.constant 0 : index
    %c0_1 = arith.constant 0 : index
    %3 = vector.load %arg2[%c0, %c0_1] : memref<8x32xbf16, #tpu.memory_space<vmem>>, vector<8x32xbf16>
    %c0_2 = arith.constant 0 : index
    %c0_3 = arith.constant 0 : index
    %4 = vector.load %arg3[%c0_2, %c0_3] : memref<32x128xbf16, #tpu.memory_space<vmem>>, vector<32x128xbf16>
    %cst = arith.constant dense<0.000000e+00> : vector<8x128xf32>
    %5 = tpu.matmul %3, %4, %cst {dimension_numbers = #tpu.dot_dimension_numbers<[1], [0], [0], [1], [0, 0, 1, 1], [], []>} : vector<8x32xbf16>, vector<32x128xbf16>, vector<8x128xf32> -> vector<8x128xf32>
    %c8_i32 = arith.constant 8 : i32
    %6 = arith.muli %arg0, %c8_i32 : i32
    %c128_i32 = arith.constant 128 : i32
    %7 = arith.muli %arg1, %c128_i32 : i32
    %c128_i32_4 = arith.constant 128 : i32
    %8 = arith.addi %7, %c128_i32_4 : i32
    %9 = arith.cmpi slt, %6, %8 : i32
    %c8_i32_5 = arith.constant 8 : i32
    %10 = arith.addi %6, %c8_i32_5 : i32
    %11 = arith.cmpi slt, %7, %10 : i32
    %12 = arith.andi %9, %11 : i1
    %c128_i32_6 = arith.constant 128 : i32
    %13 = arith.addi %7, %c128_i32_6 : i32
    %c8_i32_7 = arith.constant 8 : i32
    %14 = arith.cmpi sgt, %13, %c8_i32_7 : i32
    %15 = arith.ori %12, %14 : i1
    %16 = arith.extui %15 : i1 to i32
    %c0_i32_8 = arith.constant 0 : i32
    %17 = arith.cmpi ne, %16, %c0_i32_8 : i32
    scf.if %17 {
      %24 = tpu.iota {dimensions = array<i32: 0>} : vector<8x128xi32>
      %25 = vector.broadcast %6 : i32 to vector<8x128xi32>
      %26 = arith.addi %25, %24 : vector<8x128xi32>
      %27 = tpu.iota {dimensions = array<i32: 1>} : vector<8x128xi32>
      %28 = vector.broadcast %7 : i32 to vector<8x128xi32>
      %29 = arith.addi %28, %27 : vector<8x128xi32>
      %30 = arith.cmpi eq, %26, %29 : vector<8x128xi32>
      %c8_i32_12 = arith.constant 8 : i32
      %31 = vector.broadcast %c8_i32_12 : i32 to vector<8x128xi32>
      %32 = arith.cmpi sge, %29, %31 : vector<8x128xi32>
      %33 = arith.ori %30, %32 : vector<8x128xi1>
      %cst_13 = arith.constant 0xFF800000 : f32
      %34 = vector.broadcast %cst_13 : f32 to vector<8x128xf32>
      %35 = arith.select %33, %34, %5 : vector<8x128xi1>, vector<8x128xf32>
      %c0_14 = arith.constant 0 : index
      %c0_15 = arith.constant 0 : index
      %36 = vector.load %arg5[%c0_14, %c0_15] : memref<8x1xf32, #tpu.memory_space<vmem>>, vector<8x1xf32>
      %cst_16 = arith.constant dense<0xFF800000> : vector<8xf32>
      %37 = vector.multi_reduction <maximumf>, %35, %cst_16 [1] : vector<8x128xf32> to vector<8xf32>
      %38 = vector.shape_cast %37 : vector<8xf32> to vector<8x1xf32>
      %39 = arith.maximumf %36, %38 : vector<8x1xf32>
      %40 = arith.subf %36, %39 : vector<8x1xf32>
      %41 = math.exp %40 : vector<8x1xf32>
      %c0_17 = arith.constant 0 : index
      %c0_18 = arith.constant 0 : index
      %42 = vector.load %arg6[%c0_17, %c0_18] : memref<8x1xf32, #tpu.memory_space<vmem>>, vector<8x1xf32>
      %43 = arith.mulf %41, %42 : vector<8x1xf32>
      %44 = vector.broadcast %39 : vector<8x1xf32> to vector<8x128xf32>
      %45 = arith.subf %35, %44 : vector<8x128xf32>
      %46 = math.exp %45 : vector<8x128xf32>
      %cst_19 = arith.constant dense<0.000000e+00> : vector<8xf32>
      %47 = vector.multi_reduction <add>, %46, %cst_19 [1] : vector<8x128xf32> to vector<8xf32>
      %48 = vector.shape_cast %47 : vector<8xf32> to vector<8x1xf32>
      %49 = arith.addf %43, %48 : vector<8x1xf32>
      %c0_20 = arith.constant 0 : index
      %c0_21 = arith.constant 0 : index
      %50 = vector.load %arg6[%c0_20, %c0_21] : memref<8x1xf32, #tpu.memory_space<vmem>>, vector<8x1xf32>
      tpu.vector_store %arg6[%c0_20, %c0_21], %49 {strides = array<i32>} : memref<8x1xf32, #tpu.memory_space<vmem>>, vector<8x1xf32>,
      %c0_22 = arith.constant 0 : index
      %c0_23 = arith.constant 0 : index
      %51 = vector.load %arg5[%c0_22, %c0_23] : memref<8x1xf32, #tpu.memory_space<vmem>>, vector<8x1xf32>
      tpu.vector_store %arg5[%c0_22, %c0_23], %39 {strides = array<i32>} : memref<8x1xf32, #tpu.memory_space<vmem>>, vector<8x1xf32>,
    } else {
    }
    %true = arith.constant true
    %18 = arith.xori %15, %true : i1
    %19 = arith.extui %18 : i1 to i32
    %c0_i32_9 = arith.constant 0 : i32
    %20 = arith.cmpi ne, %19, %c0_i32_9 : i32
    scf.if %20 {
      %c0_12 = arith.constant 0 : index
      %c0_13 = arith.constant 0 : index
      %24 = vector.load %arg5[%c0_12, %c0_13] : memref<8x1xf32, #tpu.memory_space<vmem>>, vector<8x1xf32>
      %cst_14 = arith.constant dense<0xFF800000> : vector<8xf32>
      %25 = vector.multi_reduction <maximumf>, %5, %cst_14 [1] : vector<8x128xf32> to vector<8xf32>
      %26 = vector.shape_cast %25 : vector<8xf32> to vector<8x1xf32>
      %27 = arith.maximumf %24, %26 : vector<8x1xf32>
      %28 = arith.subf %24, %27 : vector<8x1xf32>
      %29 = math.exp %28 : vector<8x1xf32>
      %c0_15 = arith.constant 0 : index
      %c0_16 = arith.constant 0 : index
      %30 = vector.load %arg6[%c0_15, %c0_16] : memref<8x1xf32, #tpu.memory_space<vmem>>, vector<8x1xf32>
      %31 = arith.mulf %29, %30 : vector<8x1xf32>
      %32 = vector.broadcast %27 : vector<8x1xf32> to vector<8x128xf32>
      %33 = arith.subf %5, %32 : vector<8x128xf32>
      %34 = math.exp %33 : vector<8x128xf32>
      %cst_17 = arith.constant dense<0.000000e+00> : vector<8xf32>
      %35 = vector.multi_reduction <add>, %34, %cst_17 [1] : vector<8x128xf32> to vector<8xf32>
      %36 = vector.shape_cast %35 : vector<8xf32> to vector<8x1xf32>
      %37 = arith.addf %31, %36 : vector<8x1xf32>
      %c0_18 = arith.constant 0 : index
      %c0_19 = arith.constant 0 : index
      %38 = vector.load %arg6[%c0_18, %c0_19] : memref<8x1xf32, #tpu.memory_space<vmem>>, vector<8x1xf32>
      tpu.vector_store %arg6[%c0_18, %c0_19], %37 {strides = array<i32>} : memref<8x1xf32, #tpu.memory_space<vmem>>, vector<8x1xf32>,
      %c0_20 = arith.constant 0 : index
      %c0_21 = arith.constant 0 : index
      %39 = vector.load %arg5[%c0_20, %c0_21] : memref<8x1xf32, #tpu.memory_space<vmem>>, vector<8x1xf32>
      tpu.vector_store %arg5[%c0_20, %c0_21], %27 {strides = array<i32>} : memref<8x1xf32, #tpu.memory_space<vmem>>, vector<8x1xf32>,
    } else {
    }
    %c0_i32_10 = arith.constant 0 : i32
    %21 = arith.cmpi eq, %arg1, %c0_i32_10 : i32
    %22 = arith.extui %21 : i1 to i32
    %c0_i32_11 = arith.constant 0 : i32
    %23 = arith.cmpi ne, %22, %c0_i32_11 : i32
    scf.if %23 {
      %c0_12 = arith.constant 0 : index
      %c0_13 = arith.constant 0 : index
      %24 = vector.load %arg5[%c0_12, %c0_13] : memref<8x1xf32, #tpu.memory_space<vmem>>, vector<8x1xf32>
      %c0_14 = arith.constant 0 : index
      %c0_15 = arith.constant 0 : index
      %25 = vector.load %arg6[%c0_14, %c0_15] : memref<8x1xf32, #tpu.memory_space<vmem>>, vector<8x1xf32>
      %26 = math.log %25 : vector<8x1xf32>
      %27 = arith.addf %24, %26 : vector<8x1xf32>
      %c0_16 = arith.constant 0 : index
      %c0_17 = arith.constant 0 : index
      %28 = vector.load %arg4[%c0_16, %c0_17] : memref<8x1xf32, #tpu.memory_space<vmem>>, vector<8x1xf32>
      tpu.vector_store %arg4[%c0_16, %c0_17], %27 {strides = array<i32>} : memref<8x1xf32, #tpu.memory_space<vmem>>, vector<8x1xf32>,
    } else {
    }
    return
  }
  func.func @transform_0(%arg0: i32, %arg1: i32) -> (i32, i32) {
    %c0_i32 = arith.constant 0 : i32
    %c0_i32_0 = arith.constant 0 : i32
    return %arg0, %c0_i32 : i32, i32
  }
  func.func @transform_1(%arg0: i32, %arg1: i32) -> (i32, i32) {
    %c0_i32 = arith.constant 0 : i32
    %c0_i32_0 = arith.constant 0 : i32
    return %c0_i32, %arg1 : i32, i32
  }
  func.func @transform_2(%arg0: i32, %arg1: i32) -> (i32, i32) {
    %c0_i32 = arith.constant 0 : i32
    %c0_i32_0 = arith.constant 0 : i32
    return %arg0, %c0_i32 : i32, i32
  }
}

</mosaic_0001>

<llo_original>
// kernel: tpu_custom_call.1
$region0: #{tpu_custom_call.1}
  #allocation0 [shape = 'u32[]', space=smem, size = 0x4, offset = 0x4, fixed_abs, tag = 'smem constant byte address 0x4 - core index']
  #allocation1 [shape = 'u32[144,128]{1,0:T(1,128)}', space=vmem, size = 0x12000, scoped, tag = 'internal scratch']
  #allocation2 [shape = 'f32[8,1]{1,0:T(8,128)}', space=vmem, size = 0x1000, scoped, tag = 'scratch operand']
  #allocation3 [shape = 'f32[8,1]{1,0:T(8,128)}', space=vmem, size = 0x1000, scoped, tag = 'scratch operand']
  %s0 = inlined_call_operand.hbm [shape: bf16[8,32], index: 0, kind: input, shape index: {}]
  %s1 = inlined_call_operand.hbm [shape: bf16[32,128], index: 1, kind: input, shape index: {}]
  %s2 = inlined_call_operand.vmem [shape: f32[8,1], index: 2, kind: output, shape index: {}]
  %s3 = sld [smem:[#allocation0]]
  $region42: #{tpu_custom_call.1} parent=0
    _
  %s5 = ssub.s32 1, %s3
  %s6 = scalar_select 0, %s5, %s3
  $region1: #{tpu_custom_call.1} parent=0
    #allocation4 [shape = 'u8[2048]{0}', space=vmem, size = 0x800, scoped, tag = 'input window, operand 0, single buffered']
    #allocation5 [shape = 's32[1]{0}', space=sflag, size = 0x4, scoped, tag = 'scoped memory for tpu_custom_call.1']
    #allocation6 [shape = 'u8[8192]{0}', space=vmem, size = 0x2000, scoped, tag = 'input window, operand 1, single buffered']
    #allocation7 [shape = 's32[1]{0}', space=sflag, size = 0x4, scoped, tag = 'scoped memory for tpu_custom_call.1']
    %7 = vsyncpa [#allocation5], 0
    %8 = vsyncpa [#allocation7], 0
    // Predicated region
    $region2: #{tpu_custom_call.1} parent=1 // pred_check
      _
    $region3: #{tpu_custom_call.1} parent=1 // pred_check_branch
      %10 = sbr.rel (0) target = $region5
    $region4: #{tpu_custom_call.1} parent=1 // pred_region
      %s12 = ssub.s32 64, 64
      %13 = vsyncadd [#allocation5], %s12
      %s15 = sshll.u32 [#allocation4], 4
      %s16 = int_to_ptr.vmem [resolvable:$true] %s15
      %18 = dma.hbm_to_vmem [thread:$0]  %s0, 64, %s16, [#allocation5]
    $region5: #{tpu_custom_call.1} parent=1 // pred_fallthru
      _
    // Predicated region
    $region6: #{tpu_custom_call.1} parent=1 // pred_check
      _
    $region7: #{tpu_custom_call.1} parent=1 // pred_check_branch
      %20 = sbr.rel (0) target = $region9
    $region8: #{tpu_custom_call.1} parent=1 // pred_region
      %s22 = ssub.s32 256, 256
      %23 = vsyncadd [#allocation7], %s22
      %s24 = sshll.u32 [#allocation6], 4
      %s25 = int_to_ptr.vmem [resolvable:$true] %s24
      %30 = dma.hbm_to_vmem [thread:$0]  %s1, 256, %s25, [#allocation7], 64, 64, 4
    $region9: #{tpu_custom_call.1} parent=1 // pred_fallthru
      _
    // Predicated region
    $region10: #{tpu_custom_call.1} parent=1 // pred_check
      _
    $region11: #{tpu_custom_call.1} parent=1 // pred_check_branch
      %32 = sbr.rel (0) target = $region13
    $region12: #{tpu_custom_call.1} parent=1 // pred_region
      %33 = dma.done [#allocation5], 64
    $region13: #{tpu_custom_call.1} parent=1 // pred_fallthru
      _
    // Predicated region
    $region14: #{tpu_custom_call.1} parent=1 // pred_check
      _
    $region15: #{tpu_custom_call.1} parent=1 // pred_check_branch
      %35 = sbr.rel (0) target = $region17
    $region16: #{tpu_custom_call.1} parent=1 // pred_region
      %36 = dma.done [#allocation7], 256
    $region17: #{tpu_custom_call.1} parent=1 // pred_fallthru
      _
    %p38 = scmp.eq.s32.totalorder 0, 0
    // Predicated region
    $region18: #{tpu_custom_call.1} parent=1 // pred_check
      %p39 = pneg %p38
    $region19: #{tpu_custom_call.1} parent=1 // pred_check_branch
      %41 = sbr.rel (%p39) target = $region21
    $region20: #{tpu_custom_call.1} parent=1 // pred_region
      %vm42 = vcmask 7168
      %43 = vst.msk [vmem:[#allocation2] sm:$0xff] %vm42, -inf
      %44 = vst.msk [vmem:[#allocation3] sm:$0xff] %vm42, 0.0
    $region21: #{tpu_custom_call.1} parent=1 // pred_fallthru
      _
    %v45 = vld [vmem:[#allocation4] sm:$0xf]
    %v46 = vld [vmem:[#allocation6] sm:$0xf]
    %v47 = vld [vmem:[#allocation6 + $0x4] sm:$0xf]
    %v48 = vld [vmem:[#allocation6 + $0x8] sm:$0xf]
    %v49 = vld [vmem:[#allocation6 + $0xc] sm:$0xf]
    %v54 = vunpack.c.l.b16 %v46
    %v55 = vunpack.c.l.b16 %v47
    %v56 = vunpack.c.l.b16 %v48
    %v57 = vunpack.c.l.b16 %v49
    %v58 = vpack.c.b16 %v55, %v54
    %v59 = vpack.c.b16 %v57, %v56
    %vm62 = vcmask 261120
    %v64 = vsel %vm62, %v45, 0
    %66 = vmatprep.subr.bf16.mxu0 0
    %67 = vmatpush1.bf16.msra.mxu0 0
    %68 = vmatprep.subr.bf16.mxu0 0
    %69 = vmatpush1.bf16.msra.mxu0 0
    %70 = vmatprep.subr.bf16.mxu0 0
    %71 = vmatpush1.bf16.msra.mxu0 0
    %72 = vmatprep.subr.bf16.mxu0 0
    %73 = vmatpush1.bf16.msra.mxu0 0
    %74 = vmatprep.subr.bf16.mxu0 0
    %75 = vmatpush1.bf16.msra.mxu0 0
    %76 = vmatprep.subr.bf16.mxu0 0
    %77 = vmatpush1.bf16.msra.mxu0 0
    %78 = vmatprep.subr.bf16.mxu0 0
    %79 = vmatpush1.bf16.msra.mxu0 %v59
    %80 = vmatprep.subr.bf16.mxu0 0
    %81 = vmatpush1.bf16.msra.mxu0 %v58
    %82 = vmatprep.subr.bf16.mxu0 0
    %83 = vmatpush2.bf16.msra.mxu0 0
    %84 = vmatprep.subr.bf16.mxu0 0
    %85 = vmatpush2.bf16.msra.mxu0 0
    %86 = vmatprep.subr.bf16.mxu0 0
    %87 = vmatpush2.bf16.msra.mxu0 0
    %88 = vmatprep.subr.bf16.mxu0 0
    %89 = vmatpush2.bf16.msra.mxu0 0
    %90 = vmatprep.subr.bf16.mxu0 0
    %91 = vmatpush2.bf16.msra.mxu0 0
    %92 = vmatprep.subr.bf16.mxu0 0
    %93 = vmatpush2.bf16.msra.mxu0 0
    %94 = vmatprep.subr.bf16.mxu0 0
    %95 = vmatpush2.bf16.msra.mxu0 0
    %96 = vmatprep.subr.bf16.mxu0 0
    %97 = vmatpush2.bf16.msra.mxu0 0
    %98 = vmatprep.mubr.bf16.mxu0 0
    %99 = vmatmul.mubr.bf16.gmra.mxu0 %v64
    %v100 = vpop.f32.mrf.mxu0
    %v101 = vadd.f32 0.0, %v100
    %v102 = vpop.f32.mrf.mxu0
    %v103 = vpop.f32.mrf.mxu0
    %v104 = vpop.f32.mrf.mxu0
    %105 = vdwg.mxu0
    %s106 = smul.u32 0, 8
    %s107 = smul.u32 0, 128
    %s108 = sadd.s32 %s107, 128
    %p109 = scmp.lt.s32.totalorder %s106, %s108
    %s110 = sadd.s32 %s106, 8
    %p111 = scmp.lt.s32.totalorder %s107, %s110
    %p112 = pnand %p109, %p111
    %p113 = pneg %p112
    %p114 = scmp.gt.s32.totalorder %s108, 8
    %p115 = por %p113, %p114
    // Predicated region
    $region22: #{tpu_custom_call.1} parent=1 // pred_check
      %p116 = pneg %p115
    $region23: #{tpu_custom_call.1} parent=1 // pred_check_branch
      %118 = sbr.rel (%p116) target = $region25
    $region24: #{tpu_custom_call.1} parent=1 // pred_region
      %v119 = vlaneseq
      %v120 = vshrl.u32 %v119, 7
      %v121 = vstv %s106
      %v122 = vadd.s32 %v121, %v120
      %v123 = vlaneseq
      %v124 = vand.u32 %v123, 127
      %v125 = vstv %s107
      %v126 = vadd.s32 %v125, %v124
      %vm127 = vcmp.eq.s32.totalorder %v122, %v126
      %vm128 = vcmp.ge.s32.totalorder %v126, 8
      %vm129 = vmor %vm127, %vm128
      %v130 = vsel %vm129, -inf, %v101
      %v131 = vld [vmem:[#allocation2] sm:$0xff]
      %132 = vmax.xlane.f32.xlu0 %v130
      %v133 = vpop.xlane.xlu0 %132
      %v134 = vmax.f32 %v131, %v133
      %v135 = vsub.f32 %v131, %v134
      %v136 = vmul.f32 %v135, 1.442695
      %v137 = vpow.pop %v136
      %v138 = vld [vmem:[#allocation3] sm:$0xff]
      %v139 = vmul.f32 %v137, %v138
      %141 = vset.pattern.permute.xlu0 0
      %142 = vperm.xlu0 %141, %v134
      %v143 = vpop.permute.xlu0 %142
      %v145 = vsub.f32 %v130, %v143
      %v146 = vmul.f32 %v145, 1.442695
      %v147 = vpow.pop %v146
      %148 = vadd.xlane.f32.xlu0 %v147
      %v149 = vpop.xlane.xlu0 %148
      %v150 = vadd.f32 %v139, %v149
      %vm151 = vcmask 7168
      %152 = vst.msk [vmem:[#allocation3] sm:$0xff] %vm151, %v150
      %153 = vst.msk [vmem:[#allocation2] sm:$0xff] %vm151, %v134
    $region25: #{tpu_custom_call.1} parent=1 // pred_fallthru
      _
    %p154 = pneg %p115
    // Predicated region
    $region26: #{tpu_custom_call.1} parent=1 // pred_check
      _
    $region27: #{tpu_custom_call.1} parent=1 // pred_check_branch
      %156 = sbr.rel (%p115) target = $region29
    $region28: #{tpu_custom_call.1} parent=1 // pred_region
      %v157 = vld [vmem:[#allocation2] sm:$0xff]
      %158 = vmax.xlane.f32.xlu0 %v101
      %v159 = vpop.xlane.xlu0 %158
      %v160 = vmax.f32 %v157, %v159
      %v161 = vsub.f32 %v157, %v160
      %v162 = vmul.f32 %v161, 1.442695
      %v163 = vpow.pop %v162
      %v164 = vld [vmem:[#allocation3] sm:$0xff]
      %v165 = vmul.f32 %v163, %v164
      %167 = vset.pattern.permute.xlu0 0
      %168 = vperm.xlu0 %167, %v160
      %v169 = vpop.permute.xlu0 %168
      %v171 = vsub.f32 %v101, %v169
      %v172 = vmul.f32 %v171, 1.442695
      %v173 = vpow.pop %v172
      %174 = vadd.xlane.f32.xlu0 %v173
      %v175 = vpop.xlane.xlu0 %174
      %v176 = vadd.f32 %v165, %v175
      %vm177 = vcmask 7168
      %178 = vst.msk [vmem:[#allocation3] sm:$0xff] %vm177, %v176
      %179 = vst.msk [vmem:[#allocation2] sm:$0xff] %vm177, %v160
    $region29: #{tpu_custom_call.1} parent=1 // pred_fallthru
      _
    // Predicated region
    $region30: #{tpu_custom_call.1} parent=1 // pred_check
      %p180 = pneg %p38
    $region31: #{tpu_custom_call.1} parent=1 // pred_check_branch
      %182 = sbr.rel (%p180) target = $region33
    $region32: #{tpu_custom_call.1} parent=1 // pred_region
      %v183 = vld [vmem:[#allocation2] sm:$0xff]
      %v184 = vld [vmem:[#allocation3] sm:$0xff]
      %v185 = vlog2.pop %v184
      %v186 = vmul.f32 %v185, 0.6931472
      %v187 = vadd.f32 %v183, %v186
      %vm188 = vcmask 7168
      %189 = vst.msk [vmem:[%s2] sm:$0xff] %vm188, %v187
    $region33: #{tpu_custom_call.1} parent=1 // pred_fallthru
      _
    // Predicated region
    $region34: #{tpu_custom_call.1} parent=1 // pred_check
      _
    $region35: #{tpu_custom_call.1} parent=1 // pred_check_branch
      %191 = sbr.rel (0) target = $region37
    $region36: #{tpu_custom_call.1} parent=1 // pred_region
      _
    $region37: #{tpu_custom_call.1} parent=1 // pred_fallthru
      _
    // Predicated region
    $region38: #{tpu_custom_call.1} parent=1 // pred_check
      _
    $region39: #{tpu_custom_call.1} parent=1 // pred_check_branch
      %193 = sbr.rel (0) target = $region41
    $region40: #{tpu_custom_call.1} parent=1 // pred_region
      _
    $region41: #{tpu_custom_call.1} parent=1 // pred_fallthru
      _
    %194 = vsyncpa [#allocation5], 1
    %195 = vsyncpa [#allocation7], 1

</llo_original>
